<compile_context>
chip_gen: v5e
topology: v5e:2x2
jax: 0.10.0
libtpu: 0.0.40
codegen_flags: <defaults>
</compile_context>

<pallas_src>
import functools

import jax
import jax.numpy as jnp
from jax.experimental import pallas as pl
from jax.experimental.pallas import tpu as pltpu


_LANE = 128
_SUBLANE = 8
_DEFAULT_TILE_ELEMS = 512 * 1024  # f32 elements per channel per grid step


# --------------------------------------------------------------------------
# Dense path: spatial dim reshaped to (rows, 128); blocks are fully lane/
# sublane dense.  Emits per-(batch, split) per-channel lane-vector sums.
# --------------------------------------------------------------------------
def _dense_kernel(x_ref, o_ref, acc_ref, *, rows, r_tile, s_per, masked):
    # x_ref: (1, 3, r_tile, 128); o_ref: (1, 1, 3, 128) f32; acc: (1, 3, 128) f32
    p = pl.program_id(1)
    s = pl.program_id(2)

    @pl.when(s == 0)
    def _init():
        acc_ref[...] = jnp.zeros_like(acc_ref)

    x = x_ref[...]

    if masked:
        last = s_per - 1

        @pl.when(s < last)
        def _acc_full():
            acc_ref[...] += jnp.sum(x, axis=2, dtype=jnp.float32)

        @pl.when(s == last)
        def _acc_masked():
            # Only the globally-last row block can be ragged; zero its
            # out-of-range rows so the divisor stays exactly H*W.
            row0 = (p * s_per + s) * r_tile
            row = row0 + jax.lax.broadcasted_iota(
                jnp.int32, (1, 1, r_tile, _LANE), 2)
            xm = jnp.where(row < rows, x, 0)
            acc_ref[...] += jnp.sum(xm, axis=2, dtype=jnp.float32)
    else:
        acc_ref[...] += jnp.sum(x, axis=2, dtype=jnp.float32)

    @pl.when(s == s_per - 1)
    def _store():
        o_ref[...] = acc_ref[...].reshape(1, 1, 3, _LANE)


def _channel_sums_dense(xf, n, tile_elems):
    B, C, _ = xf.shape
    itemsize = jnp.dtype(xf.dtype).itemsize
    rows = n // _LANE
    xd = xf.reshape(B, C, rows, _LANE)

    # Target row-tile: ~tile_elems f32-equivalent elements per channel.
    eff_elems = tile_elems * max(1, 4 // itemsize)
    target_rows = max(_SUBLANE, (eff_elems // _LANE) // _SUBLANE * _SUBLANE)

    if rows <= target_rows:
        r_tile, masked = rows, False          # full extent: always legal
    else:
        r_tile = 0
        r = target_rows
        while r >= _SUBLANE:                  # prefer a divisor -> no mask
            if rows % r == 0:
                r_tile = r
                break
            r -= _SUBLANE
        if r_tile:
            masked = False
        else:
            r_tile, masked = target_rows, True

    s_total = pl.cdiv(rows, r_tile)
    # 2-way parallel spatial split (keeps both v7x TCs busy for small B).
    n_split = 2 if (s_total >= 2 and s_total % 2 == 0) else 1
    s_per = s_total // n_split

    kernel = functools.partial(
        _dense_kernel, rows=rows, r_tile=r_tile, s_per=s_per, masked=masked)

    cost = pl.CostEstimate(
        flops=int(3 * B * n),
        transcendentals=0,
        bytes_accessed=int(B * 3 * n * itemsize + B * n_split * 3 * _LANE * 4),
    )

    partial_sums = pl.pallas_call(
        kernel,
        out_shape=jax.ShapeDtypeStruct((B, n_split, C, _LANE), jnp.float32),
        grid_spec=pltpu.PrefetchScalarGridSpec(
            num_scalar_prefetch=0,
            grid=(B, n_split, s_per),
            in_specs=[pl.BlockSpec(
                (1, C, r_tile, _LANE),
                lambda b, p, s: (b, 0, p * s_per + s, 0))],
            out_specs=pl.BlockSpec(
                (1, 1, C, _LANE), lambda b, p, s: (b, p, 0, 0)),
            scratch_shapes=[pltpu.VMEM((1, C, _LANE), jnp.float32)],
        ),
        compiler_params=pltpu.CompilerParams(
            dimension_semantics=("parallel", "parallel", "arbitrary"),
            vmem_limit_bytes=32 * 1024 * 1024,
        ),
        cost_estimate=cost,
    )(xd)
    # Single cross-lane reduce + split combine, done once in the wrapper.
    return jnp.sum(partial_sums, axis=(1, 3))  # (B, 3) f32


# --------------------------------------------------------------------------
# Fallback path: H*W not a multiple of 128 -> flat (B, 3, n) layout.
# --------------------------------------------------------------------------
def _flat_kernel(x_ref, o_ref, acc_ref, *, n, tile, s_steps, masked):
    # x_ref: (1, 3, tile); o_ref: (1, 1, 3) f32; acc_ref: (1, 3) f32
    s = pl.program_id(1)

    @pl.when(s == 0)
    def _init():
        acc_ref[...] = jnp.zeros_like(acc_ref)

    x = x_ref[...]

    if masked:
        last = s_steps - 1

        @pl.when(s < last)
        def _acc_full():
            acc_ref[...] += jnp.sum(x, axis=2, dtype=jnp.float32)

        @pl.when(s == last)
        def _acc_masked():
            col = s * tile + jax.lax.broadcasted_iota(jnp.int32, (1, 1, tile), 2)
            xm = jnp.where(col < n, x, 0)
            acc_ref[...] += jnp.sum(xm, axis=2, dtype=jnp.float32)
    else:
        acc_ref[...] += jnp.sum(x, axis=2, dtype=jnp.float32)

    @pl.when(s == s_steps - 1)
    def _store():
        o_ref[...] = acc_ref[...].reshape(1, 1, 3)


def _channel_sums_flat(xf, n, tile_elems):
    B, C, _ = xf.shape
    itemsize = jnp.dtype(xf.dtype).itemsize
    eff_elems = tile_elems * max(1, 4 // itemsize)

    if n <= eff_elems:
        tile, masked = n, False
    else:
        # n % 128 != 0 here, so no lane-aligned tile can divide n exactly.
        tile = max(_LANE, (eff_elems // _LANE) * _LANE)
        masked = True

    s_steps = pl.cdiv(n, tile)
    kernel = functools.partial(
        _flat_kernel, n=n, tile=tile, s_steps=s_steps, masked=masked)

    cost = pl.CostEstimate(
        flops=int(3 * B * n),
        transcendentals=0,
        bytes_accessed=int(B * 3 * n * itemsize + B * 3 * 4),
    )

    partial_sums = pl.pallas_call(
        kernel,
        out_shape=jax.ShapeDtypeStruct((B, 1, C), jnp.float32),
        grid_spec=pltpu.PrefetchScalarGridSpec(
            num_scalar_prefetch=0,
            grid=(B, s_steps),
            in_specs=[pl.BlockSpec((1, C, tile), lambda b, s: (b, 0, s))],
            out_specs=pl.BlockSpec((1, 1, C), lambda b, s: (b, 0, 0)),
            scratch_shapes=[pltpu.VMEM((1, C), jnp.float32)],
        ),
        compiler_params=pltpu.CompilerParams(
            dimension_semantics=("parallel", "arbitrary"),
            vmem_limit_bytes=32 * 1024 * 1024,
        ),
        cost_estimate=cost,
    )(xf)
    return partial_sums[:, 0, :]  # (B, 3) f32


# --------------------------------------------------------------------------
# Public wrapper (matches PyTorch L_color.forward)
# --------------------------------------------------------------------------
def l_color(x, *, tile_elems=_DEFAULT_TILE_ELEMS):
    """x: (B, 3, H, W) float array -> (B, 1, 1, 1), matching PyTorch L_color."""
    B, C, H, W = x.shape
    assert C == 3, "L_color expects 3 channels (RGB)"
    n = H * W
    xf = x.reshape(B, C, n)  # free for contiguous NCHW

    if n % _LANE == 0:
        sums = _channel_sums_dense(xf, n, tile_elems)   # (B, 3) f32
    else:
        sums = _channel_sums_flat(xf, n, tile_elems)    # (B, 3) f32

    # Tiny finalize (16 flops per image) stays in the JAX wrapper.
    m = sums * jnp.float32(1.0 / n)
    mr, mg, mb = m[:, 0], m[:, 1], m[:, 2]
    drg = (mr - mg) ** 2
    drb = (mr - mb) ** 2
    dgb = (mb - mg) ** 2
    k = jnp.sqrt(drg * drg + drb * drb + dgb * dgb)
    return k.reshape(B, 1, 1, 1).astype(x.dtype)


def l_color_ref(x):
    """Pure-JAX reference of the PyTorch forward."""
    mean_rgb = jnp.mean(x, axis=(2, 3), keepdims=True)
    mr, mg, mb = mean_rgb[:, 0:1], mean_rgb[:, 1:2], mean_rgb[:, 2:3]
    drg = (mr - mg) ** 2
    drb = (mr - mb) ** 2
    dgb = (mb - mg) ** 2
    return jnp.sqrt(drg ** 2 + drb ** 2 + dgb ** 2)


if __name__ == "__main__":
    # 1) Dense single-tile path: n = 256 (multiple of 128), rows = 2.
    x = jax.random.uniform(jax.random.PRNGKey(0), (2, 3, 16, 16),
                           dtype=jnp.float32)
    out = jax.block_until_ready(l_color(x))
    assert out.shape == (2, 1, 1, 1)
    assert jnp.allclose(out, l_color_ref(x), atol=1e-5, rtol=1e-5)

    # 2) Dense multi-tile + 2-way parallel spatial split:
    #    n = 2048 -> rows = 16, r_tile = 8, 2 splits x 1 step each.
    x2 = jax.random.uniform(jax.random.PRNGKey(1), (1, 3, 32, 64),
                            dtype=jnp.float32)
    out2 = jax.block_until_ready(l_color(x2, tile_elems=1024))
    assert out2.shape == (1, 1, 1, 1)
    assert jnp.allclose(out2, l_color_ref(x2), atol=1e-5, rtol=1e-5)

    # 3) Dense masked-tail path: rows = 20, r_tile = 8 -> 3 steps, ragged last.
    x3 = jax.random.uniform(jax.random.PRNGKey(2), (2, 3, 20, 128),
                            dtype=jnp.float32)
    out3 = jax.block_until_ready(l_color(x3, tile_elems=1024))
    assert jnp.allclose(out3, l_color_ref(x3), atol=1e-5, rtol=1e-5)

    # 4) Flat fallback: n = 400 (not a multiple of 128), masked multi-tile.
    x4 = jax.random.uniform(jax.random.PRNGKey(3), (2, 3, 20, 20),
                            dtype=jnp.float32)
    out4 = jax.block_until_ready(l_color(x4, tile_elems=128))
    assert jnp.allclose(out4, l_color_ref(x4), atol=1e-5, rtol=1e-5)

    print("KERNEL_OK")
</pallas_src>

<mosaic_0001>
module attributes {stable_mosaic.version = 11 : i64} {
  func.func @_dense_kernel(%arg0: i32, %arg1: i32, %arg2: i32, %arg3: memref<1x3x2x128xf32, #tpu.memory_space<vmem>>, %arg4: memref<1x1x3x128xf32, #tpu.memory_space<vmem>>, %arg5: memref<1x3x128xf32, #tpu.memory_space<vmem>>) attributes {dimension_semantics = [#tpu.dimension_semantics<parallel>, #tpu.dimension_semantics<parallel>, #tpu.dimension_semantics<arbitrary>], iteration_bounds = array<i64: 2, 1, 1>, scalar_prefetch = 0 : i64, scratch_operands = 1 : i64, tpu.core_type = #tpu.core_type<tc>, window_params = [{transform_indices = @transform_0, window_bounds = array<i64: 1, 3, 2, 128>}, {transform_indices = @transform_1, window_bounds = array<i64: 1, 1, 3, 128>}]} {
    %c0_i32 = arith.constant 0 : i32
    %0 = arith.cmpi eq, %arg2, %c0_i32 : i32
    %1 = arith.extui %0 : i1 to i32
    %c0_i32_0 = arith.constant 0 : i32
    %2 = arith.cmpi ne, %1, %c0_i32_0 : i32
    scf.if %2 {
      %cst_12 = arith.constant 0.000000e+00 : f32
      %11 = vector.broadcast %cst_12 : f32 to vector<1x3x128xf32>
      %c0_13 = arith.constant 0 : index
      %c0_14 = arith.constant 0 : index
      %c0_15 = arith.constant 0 : index
      %12 = vector.load %arg5[%c0_13, %c0_14, %c0_15] : memref<1x3x128xf32, #tpu.memory_space<vmem>>, vector<1x3x128xf32>
      tpu.vector_store %arg5[%c0_13, %c0_14, %c0_15], %11 {strides = array<i32>} : memref<1x3x128xf32, #tpu.memory_space<vmem>>, vector<1x3x128xf32>,
    } else {
    }
    %c0 = arith.constant 0 : index
    %c0_1 = arith.constant 0 : index
    %c0_2 = arith.constant 0 : index
    %c0_3 = arith.constant 0 : index
    %3 = vector.load %arg3[%c0, %c0_1, %c0_2, %c0_3] : memref<1x3x2x128xf32, #tpu.memory_space<vmem>>, vector<1x3x2x128xf32>
    %c0_4 = arith.constant 0 : index
    %c0_5 = arith.constant 0 : index
    %c0_6 = arith.constant 0 : index
    %4 = vector.load %arg5[%c0_4, %c0_5, %c0_6] : memref<1x3x128xf32, #tpu.memory_space<vmem>>, vector<1x3x128xf32>
    %cst = arith.constant dense<0.000000e+00> : vector<1x3x128xf32>
    %5 = vector.multi_reduction <add>, %3, %cst [2] : vector<1x3x2x128xf32> to vector<1x3x128xf32>
    %6 = arith.addf %4, %5 : vector<1x3x128xf32>
    %c0_7 = arith.constant 0 : index
    %c0_8 = arith.constant 0 : index
    %c0_9 = arith.constant 0 : index
    %7 = vector.load %arg5[%c0_7, %c0_8, %c0_9] : memref<1x3x128xf32, #tpu.memory_space<vmem>>, vector<1x3x128xf32>
    tpu.vector_store %arg5[%c0_7, %c0_8, %c0_9], %6 {strides = array<i32>} : memref<1x3x128xf32, #tpu.memory_space<vmem>>, vector<1x3x128xf32>,
    %c0_i32_10 = arith.constant 0 : i32
    %8 = arith.cmpi eq, %arg2, %c0_i32_10 : i32
    %9 = arith.extui %8 : i1 to i32
    %c0_i32_11 = arith.constant 0 : i32
    %10 = arith.cmpi ne, %9, %c0_i32_11 : i32
    scf.if %10 {
      %c0_12 = arith.constant 0 : index
      %c0_13 = arith.constant 0 : index
      %c0_14 = arith.constant 0 : index
      %11 = vector.load %arg5[%c0_12, %c0_13, %c0_14] : memref<1x3x128xf32, #tpu.memory_space<vmem>>, vector<1x3x128xf32>
      %12 = vector.shape_cast %11 : vector<1x3x128xf32> to vector<1x1x3x128xf32>
      %c0_15 = arith.constant 0 : index
      %c0_16 = arith.constant 0 : index
      %c0_17 = arith.constant 0 : index
      %c0_18 = arith.constant 0 : index
      %13 = vector.load %arg4[%c0_15, %c0_16, %c0_17, %c0_18] : memref<1x1x3x128xf32, #tpu.memory_space<vmem>>, vector<1x1x3x128xf32>
      tpu.vector_store %arg4[%c0_15, %c0_16, %c0_17, %c0_18], %12 {strides = array<i32>} : memref<1x1x3x128xf32, #tpu.memory_space<vmem>>, vector<1x1x3x128xf32>,
    } else {
    }
    return
  }
  func.func @transform_0(%arg0: i32, %arg1: i32, %arg2: i32) -> (i32, i32, i32, i32) {
    %c1_i32 = arith.constant 1 : i32
    %0 = arith.muli %arg1, %c1_i32 : i32
    %1 = arith.addi %0, %arg2 : i32
    %c0_i32 = arith.constant 0 : i32
    %c0_i32_0 = arith.constant 0 : i32
    %c0_i32_1 = arith.constant 0 : i32
    return %arg0, %c0_i32, %1, %c0_i32_0 : i32, i32, i32, i32
  }
  func.func @transform_1(%arg0: i32, %arg1: i32, %arg2: i32) -> (i32, i32, i32, i32) {
    %c0_i32 = arith.constant 0 : i32
    %c0_i32_0 = arith.constant 0 : i32
    %c0_i32_1 = arith.constant 0 : i32
    return %arg0, %arg1, %c0_i32, %c0_i32_0 : i32, i32, i32, i32
  }
}

</mosaic_0001>

<llo_original>
// kernel: tpu_custom_call.1
$region0: #{tpu_custom_call.1}
  #allocation0 [shape = 'u32[]', space=smem, size = 0x4, offset = 0x4, fixed_abs, tag = 'smem constant byte address 0x4 - core index']
  #allocation1 [shape = 'u32[72,128]{1,0:T(1,128)}', space=vmem, size = 0x9000, scoped, tag = 'internal scratch']
  #allocation2 [shape = 'f32[1,3,128]{2,1,0:T(4,128)}', space=vmem, size = 0x800, scoped, tag = 'scratch operand']
  %s0 = inlined_call_operand.hbm [shape: f32[2,3,2,128], index: 0, kind: input, shape index: {}]
  %s1 = inlined_call_operand.vmem [shape: f32[2,1,3,128], index: 1, kind: output, shape index: {}]
  %s2 = sld [smem:[#allocation0]]
  $region49: #{tpu_custom_call.1} parent=0
    _
  %s4 = ssub.s32 1, %s2
  %s5 = scalar_select 0, %s4, %s2
  $region1: #{tpu_custom_call.1} parent=0
    #allocation3 [shape = 'u8[6144]{0}', space=vmem, size = 0x1800, scoped, tag = 'input window, operand 0']
    #allocation4 [shape = 's32[2]{0}', space=sflag, size = 0x8, scoped, tag = 'scoped memory for tpu_custom_call.1']
    %6 = vsyncpa [#allocation4], 0
    %s7 = scalar_lea.sflag [#allocation4], 1
    %8 = vsyncpa %s7, 0
    loop: start=0, step=1, limit=4
    $region2: #{tpu_custom_call.1} parent=1 // loop_pre_header
      _
    $region3: #{tpu_custom_call.1} parent=1 // loop_header
      %s10 = sphi 0, %s14
      %p11 = scmp.ge.s32.totalorder %s10, 4
      %s17 = sphi 0, %s36
      %s18 = sphi 0, %s32
      %s19 = sphi 0, %s28
      %s20 = sphi 0, %s17
      %s21 = sphi 0, %s18
      %s22 = sphi 0, %s19
      %s23 = sphi 0, %s20
      %s24 = sphi 0, %s21
      %s25 = sphi 0, %s22
      %s43 = sphi 0, %s45
      %s46 = sphi 0, %s43
      %s47 = sphi 0, %s46
      %s63 = sphi 0, %s47
      %s71 = sphi 0, %s73
      %s74 = sphi 0, %s71
      %s75 = sphi 0, %s74
      %s91 = sphi 0, %s75
    $region4: #{tpu_custom_call.1} parent=1 // loop_header_branch
      %13 = sbr.rel (%p11) target = $region8
    $region5: #{tpu_custom_call.1} parent=1 // loop_body
      %s15 = ssub.s32 %s10, 1
      %s16 = ssub.s32 %s10, 2
      %s26 = sadd.s32 1, %s19
      %p27 = scmp.ge.s32.totalorder %s26, 1
      %s28 = scalar_select %p27, 0, %s26
      %s29 = sadd.s32 1, %s18
      %s30 = scalar_select %p27, %s29, %s18
      %p31 = scmp.ge.s32.totalorder %s30, 1
      %s32 = scalar_select %p31, 0, %s30
      %s33 = sadd.s32 1, %s17
      %s34 = scalar_select %p31, %s33, %s17
      %p35 = scmp.ge.s32.totalorder %s34, 2
      %s36 = scalar_select %p35, 0, %s34
      %s37 = sadd.s32 %s18, %s19
      %s38 = sadd.s32 %s32, %s28
      %s39 = ssub.s32 %s17, %s36
      %s40 = ssub.s32 %s37, %s38
      %s41 = sor.u32 %s39, %s40
      %p42 = scmp.eq.s32.totalorder %s41, 0
      %s44 = sadd.s32 %s43, 1
      %s45 = scalar_select %p42, %s43, %s44
      %p48 = pneg %p42
      %p49 = scmp.eq.s32.totalorder %s10, 1
      %p50 = por %p48, %p49
      %p51 = scmp.ne.s32.totalorder %s43, %s46
      %p52 = scmp.eq.s32.totalorder %s10, 0
      %p53 = por %p51, %p52
      %p54 = scmp.ne.s32.totalorder %s43, %s46
      %p55 = scmp.eq.s32.totalorder %s15, 1
      %p56 = por %p54, %p55
      %p57 = scmp.ne.s32.totalorder %s46, %s47
      %p58 = scmp.eq.s32.totalorder %s15, 0
      %p59 = por %p57, %p58
      %p60 = scmp.ne.s32.totalorder %s46, %s47
      %p61 = scmp.eq.s32.totalorder %s16, 1
      %p62 = por %p60, %p61
      %p64 = scmp.ne.s32.totalorder %s47, %s63
      %p65 = scmp.eq.s32.totalorder %s16, 0
      %p66 = por %p64, %p65
      %s67 = ssub.s32 %s17, %s36
      %s68 = ssub.s32 %s18, %s32
      %s69 = sor.u32 %s67, %s68
      %p70 = scmp.eq.s32.totalorder %s69, 0
      %s72 = sadd.s32 %s71, 1
      %s73 = scalar_select %p70, %s71, %s72
      %p76 = pneg %p70
      %p77 = scmp.eq.s32.totalorder %s10, 1
      %p78 = por %p76, %p77
      %p79 = scmp.ne.s32.totalorder %s71, %s74
      %p80 = scmp.eq.s32.totalorder %s10, 0
      %p81 = por %p79, %p80
      %p82 = scmp.ne.s32.totalorder %s71, %s74
      %p83 = scmp.eq.s32.totalorder %s15, 1
      %p84 = por %p82, %p83
      %p85 = scmp.ne.s32.totalorder %s74, %s75
      %p86 = scmp.eq.s32.totalorder %s15, 0
      %p87 = por %p85, %p86
      %p88 = scmp.ne.s32.totalorder %s74, %s75
      %p89 = scmp.eq.s32.totalorder %s16, 1
      %p90 = por %p88, %p89
      %p92 = scmp.ne.s32.totalorder %s75, %s91
      %p93 = scmp.eq.s32.totalorder %s16, 0
      %p94 = por %p92, %p93
      %p95 = scmp.le.s32.totalorder 1, %s10
      %p96 = scmp.lt.s32.totalorder %s10, 3
      %p97 = pnand %p95, %p96
      %p98 = pneg %p97
      // Predicated region
      $region9: #{tpu_custom_call.1} parent=5 // pred_check
        _
      $region10: #{tpu_custom_call.1} parent=5 // pred_check_branch
        %100 = sbr.rel (%p97) target = $region12
      $region11: #{tpu_custom_call.1} parent=5 // pred_region
        %s101 = ssub.s32 %s10, 1
      $region12: #{tpu_custom_call.1} parent=5 // pred_fallthru
        _
      %p102 = scmp.lt.s32.totalorder %s10, 2
      // Predicated region
      $region13: #{tpu_custom_call.1} parent=5 // pred_check
        %p103 = pneg %p102
      $region14: #{tpu_custom_call.1} parent=5 // pred_check_branch
        %105 = sbr.rel (%p103) target = $region16
      $region15: #{tpu_custom_call.1} parent=5 // pred_region
        // Predicated region
        $region17: #{tpu_custom_call.1} parent=15 // pred_check
          %p106 = pneg %p53
        $region18: #{tpu_custom_call.1} parent=15 // pred_check_branch
          %108 = sbr.rel (%p106) target = $region20
        $region19: #{tpu_custom_call.1} parent=15 // pred_region
          %s109 = sand.u32 %s43, 1
          %s110 = scalar_lea.sflag [#allocation4], %s109
          %s111 = sand.u32 %s43, 1
          %s112 = smul.addr %s111, 6
          %s113 = scalar_lea.vmem [#allocation3], %s112
          %s114 = sadd.s32 %s18, %s19
          %116 = vsyncadd %s110, 0
          %s117 = smul.addr %s17, 3
          %s118 = sadd.s32 %s114, %s117
          %s119 = smul.addr %s118, 2
          %s120 = scalar_lea.hbm %s0, %s119
          %s121 = sshll.u32 %s120, 4
          %s122 = int_to_ptr.hbm [resolvable:$true] %s121
          %s123 = sshll.u32 %s113, 4
          %s124 = int_to_ptr.vmem [resolvable:$true] %s123
          %129 = dma.hbm_to_vmem [thread:$0]  %s122, 96, %s124, %s110, 32, 32, 2
        $region20: #{tpu_custom_call.1} parent=15 // pred_fallthru
          _
      $region16: #{tpu_custom_call.1} parent=5 // pred_fallthru
        _
      %p130 = scmp.le.s32.totalorder 1, %s10
      %p131 = scmp.lt.s32.totalorder %s10, 3
      %p132 = pnand %p130, %p131
      %p133 = pneg %p132
      // Predicated region
      $region21: #{tpu_custom_call.1} parent=5 // pred_check
        _
      $region22: #{tpu_custom_call.1} parent=5 // pred_check_branch
        %135 = sbr.rel (%p132) target = $region24
      $region23: #{tpu_custom_call.1} parent=5 // pred_region
        %s136 = ssub.s32 %s10, 1
        %s137 = sand.u32 %s46, 1
        %s138 = scalar_lea.sflag [#allocation4], %s137
        %s139 = sand.u32 %s46, 1
        %s140 = smul.addr %s139, 6
        %s141 = scalar_lea.vmem [#allocation3], %s140
        // Predicated region
        $region25: #{tpu_custom_call.1} parent=23 // pred_check
          %p142 = pneg %p59
        $region26: #{tpu_custom_call.1} parent=23 // pred_check_branch
          %144 = sbr.rel (%p142) target = $region28
        $region27: #{tpu_custom_call.1} parent=23 // pred_region
          %146 = dma.done %s138, 96
        $region28: #{tpu_custom_call.1} parent=23 // pred_fallthru
          _
        %s147 = sand.u32 %s46, 1
        %s148 = scalar_lea.sflag [#allocation4], %s147
        %s149 = sand.u32 %s46, 1
        %s150 = smul.addr %s149, 6
        %s151 = scalar_lea.vmem [#allocation3], %s150
        %p152 = pneg %p59
        %p153 = pneg %p56
        %p154 = pneg %p87
        %p155 = pneg %p84
        %p156 = scmp.lt.s32.totalorder %s20, 1
        %s157 = scalar_select %p156, %s20, 1
        %p158 = scmp.lt.s32.totalorder %s21, 0
        %s159 = scalar_select %p158, %s21, 0
        %s160 = sadd.s32 %s159, %s157
        %s161 = smul.addr %s160, 4
        %s162 = scalar_lea.vmem %s1, %s161
        %s163 = sadd.s32 %s21, %s22
        %p164 = scmp.lt.s32.totalorder %s20, 1
        %s165 = scalar_select %p164, %s20, 1
        %p166 = scmp.lt.s32.totalorder %s21, 0
        %s167 = scalar_select %p166, %s21, 0
        %s168 = sadd.s32 %s167, %s165
        %s169 = smul.addr %s168, 4
        %s170 = scalar_lea.vmem %s1, %s169
        %p171 = scmp.eq.s32.totalorder %s22, 0
        // Predicated region
        $region29: #{tpu_custom_call.1} parent=23 // pred_check
          %p172 = pneg %p171
        $region30: #{tpu_custom_call.1} parent=23 // pred_check_branch
          %174 = sbr.rel (%p172) target = $region32
        $region31: #{tpu_custom_call.1} parent=23 // pred_region
          %175 = vst [vmem:[#allocation2] sm:$0x7] 0.0
        $region32: #{tpu_custom_call.1} parent=23 // pred_fallthru
          _
        %v176 = vld [vmem:[%s141] sm:$0x3]
        %v177 = vld [vmem:[%s141 + $0x2] sm:$0x3]
        %v178 = vld [vmem:[%s141 + $0x4] sm:$0x3]
        %v179 = vld [vmem:[#allocation2] sm:$0x7]
        %vm180 = vcmask 1041408
        %v181 = vsel %vm180, %v176, 0.0
        %v182 = vrot.slane %v181, 4
        %v183 = vadd.f32 %v181, %v182
        %v184 = vrot.slane %v183, 2
        %v185 = vadd.f32 %v183, %v184
        %v186 = vrot.slane %v185, 1
        %v187 = vadd.f32 %v185, %v186
        %v188 = vsel %vm180, %v177, 0.0
        %v189 = vrot.slane %v188, 4
        %v190 = vadd.f32 %v188, %v189
        %v191 = vrot.slane %v190, 2
        %v192 = vadd.f32 %v190, %v191
        %v193 = vrot.slane %v192, 1
        %v194 = vadd.f32 %v192, %v193
        %v195 = vsel %vm180, %v178, 0.0
        %v196 = vrot.slane %v195, 4
        %v197 = vadd.f32 %v195, %v196
        %v198 = vrot.slane %v197, 2
        %v199 = vadd.f32 %v197, %v198
        %v200 = vrot.slane %v199, 1
        %v201 = vadd.f32 %v199, %v200
        %vm205 = vcmask 1041409
        %v206 = vsel %vm205, %v194, %v187
        %vm207 = vcmask 1042434
        %v208 = vsel %vm207, %v201, %v206
        %v210 = vadd.f32 %v179, %v208
        %211 = vst [vmem:[#allocation2] sm:$0x7] %v210
        // Predicated region
        $region33: #{tpu_custom_call.1} parent=23 // pred_check
          %p212 = pneg %p171
        $region34: #{tpu_custom_call.1} parent=23 // pred_check_branch
          %214 = sbr.rel (%p212) target = $region36
        $region35: #{tpu_custom_call.1} parent=23 // pred_region
          %v215 = vld [vmem:[#allocation2] sm:$0x7]
          %216 = vst [vmem:[%s170] sm:$0x7] %v215
        $region36: #{tpu_custom_call.1} parent=23 // pred_fallthru
          _
        %p217 = scmp.lt.s32.totalorder %s20, 1
        %s218 = scalar_select %p217, %s20, 1
        %p219 = scmp.lt.s32.totalorder %s21, 0
        %s220 = scalar_select %p219, %s21, 0
        %s221 = sadd.s32 %s220, %s218
        %s222 = smul.addr %s221, 4
        %s223 = scalar_lea.vmem %s1, %s222
        // Predicated region
        $region37: #{tpu_custom_call.1} parent=23 // pred_check
          %p224 = pneg %p84
        $region38: #{tpu_custom_call.1} parent=23 // pred_check_branch
          %226 = sbr.rel (%p224) target = $region40
        $region39: #{tpu_custom_call.1} parent=23 // pred_region
          _
        $region40: #{tpu_custom_call.1} parent=23 // pred_fallthru
          _
      $region24: #{tpu_custom_call.1} parent=5 // pred_fallthru
        _
      %p227 = scmp.le.s32.totalorder 2, %s10
      // Predicated region
      $region41: #{tpu_custom_call.1} parent=5 // pred_check
        %p228 = pneg %p227
      $region42: #{tpu_custom_call.1} parent=5 // pred_check_branch
        %230 = sbr.rel (%p228) target = $region44
      $region43: #{tpu_custom_call.1} parent=5 // pred_region
        %s231 = ssub.s32 %s10, 2
        // Predicated region
        $region45: #{tpu_custom_call.1} parent=43 // pred_check
          %p232 = pneg %p90
        $region46: #{tpu_custom_call.1} parent=43 // pred_check_branch
          %234 = sbr.rel (%p232) target = $region48
        $region47: #{tpu_custom_call.1} parent=43 // pred_region
          %p235 = scmp.lt.s32.totalorder %s23, 1
          %s236 = scalar_select %p235, %s23, 1
          %p237 = scmp.lt.s32.totalorder %s24, 0
          %s238 = scalar_select %p237, %s24, 0
          %s239 = sadd.s32 %s238, %s236
          %s240 = smul.addr %s239, 4
          %s241 = scalar_lea.vmem %s1, %s240
        $region48: #{tpu_custom_call.1} parent=43 // pred_fallthru
          _
      $region44: #{tpu_custom_call.1} parent=5 // pred_fallthru
        _
    $region6: #{tpu_custom_call.1} parent=1 // loop_footer
      %s14 = sadd.s32 1, %s10
    $region7: #{tpu_custom_call.1} parent=1 // loop_footer_branch
      %9 = sbr.rel target = $region3
    $region8: #{tpu_custom_call.1} parent=1 // loop_exit
      _
    %242 = vsyncpa [#allocation4], 1
    %s243 = scalar_lea.sflag [#allocation4], 1
    %244 = vsyncpa %s243, 1

</llo_original>
